<compile_context>
chip_gen: v7x
topology: tpu7x:2x2x1
jax: 0.10.0
libtpu: 0.0.40
codegen_flags: <defaults>
</compile_context>

<pallas_src>
import functools

import jax
import jax.numpy as jnp
from jax.experimental import pallas as pl
from jax.experimental.pallas import tpu as pltpu


def _round_up(x, m):
    return (x + m - 1) // m * m


def _lnn_kernel(x_ref, w1_ref, b1_ref, w2_ref, b2_ref, o_ref, *, o_valid):
    # ---- fc1 + ReLU (MXU matmul, f32 accumulate) ----
    h = jnp.dot(x_ref[...], w1_ref[...], preferred_element_type=jnp.float32)
    h = jnp.maximum(h + b1_ref[...], 0.0)              # (TB, Hp) + (1, Hp)

    # ---- fc2 ----
    logits = jnp.dot(h, w2_ref[...], preferred_element_type=jnp.float32)
    logits = logits + b2_ref[...]                      # (TB, Op) + (1, Op)

    # ---- numerically-stable softmax over the O_valid real classes ----
    lane = jax.lax.broadcasted_iota(jnp.int32, logits.shape, 1)
    valid = lane < o_valid
    # Use a large finite negative for the max so no inf enters the arithmetic.
    masked = jnp.where(valid, logits, jnp.float32(-1e30))
    m = jnp.max(masked, axis=-1, keepdims=True)
    e = jnp.where(valid, jnp.exp(logits - m), 0.0)     # padded lanes -> exactly 0
    denom = jnp.sum(e, axis=-1, keepdims=True)
    # Exact divide: keeps row sums at 1.0 (approx vrcp was ~1e-3 off).
    o_ref[...] = (e / denom).astype(o_ref.dtype)


def lnn_forward(x, w1, b1, w2, b2):
    """x: (B, in), w1: (in, H), b1: (H,), w2: (H, O), b2: (O,) -> (B, O) f32."""
    B, IN = x.shape
    H = w1.shape[1]
    O = w2.shape[1]

    # Pad feature axes to 128 lanes (MXU N dim / lane-dense stores); pick the
    # batch tile: 128 rows once the batch can fill the MXU M dimension, else
    # just round tiny batches up to the 8-sublane granule.
    Hp = _round_up(H, 128)
    Op = _round_up(O, 128)
    TB = 128 if B >= 128 else _round_up(B, 8)
    Bp = _round_up(B, TB)

    x_p = jnp.pad(x.astype(jnp.float32), ((0, Bp - B), (0, 0)))
    w1_p = jnp.pad(w1.astype(jnp.float32), ((0, 0), (0, Hp - H)))
    b1_p = jnp.pad(b1.astype(jnp.float32), (0, Hp - H)).reshape(1, Hp)
    w2_p = jnp.pad(w2.astype(jnp.float32), ((0, Hp - H), (0, Op - O)))
    b2_p = jnp.pad(b2.astype(jnp.float32), (0, Op - O)).reshape(1, Op)

    # VMEM budget: resident weights/biases + double-buffered x/out tiles, with
    # headroom; clamp to v7x's 64 MiB physical VMEM.
    f32 = 4
    resident = (IN * Hp + Hp * Op + Hp + Op) * f32
    per_step = (TB * IN + TB * Op) * f32
    vmem_limit = min(max(4 * (resident + 2 * per_step), 16 << 20), 64 << 20)

    out_p = pl.pallas_call(
        functools.partial(_lnn_kernel, o_valid=O),
        out_shape=jax.ShapeDtypeStruct((Bp, Op), jnp.float32),
        grid=(Bp // TB,),
        in_specs=[
            pl.BlockSpec((TB, IN), lambda i: (i, 0)),   # x: streamed over batch
            pl.BlockSpec((IN, Hp), lambda i: (0, 0)),   # w1: VMEM-resident
            pl.BlockSpec((1, Hp), lambda i: (0, 0)),    # b1: VMEM-resident
            pl.BlockSpec((Hp, Op), lambda i: (0, 0)),   # w2: VMEM-resident
            pl.BlockSpec((1, Op), lambda i: (0, 0)),    # b2: VMEM-resident
        ],
        out_specs=pl.BlockSpec((TB, Op), lambda i: (i, 0)),
        compiler_params=pltpu.CompilerParams(
            dimension_semantics=("parallel",),
            vmem_limit_bytes=vmem_limit,
        ),
    )(x_p, w1_p, b1_p, w2_p, b2_p)

    return out_p[:B, :O]


def _init_linear(key, fan_in, fan_out):
    # Mimic nn.Linear default init: U(-1/sqrt(fan_in), 1/sqrt(fan_in)).
    kw, kb = jax.random.split(key)
    bound = 1.0 / jnp.sqrt(jnp.float32(fan_in))
    # Stored as (fan_in, fan_out) == transpose of PyTorch's (fan_out, fan_in).
    w = jax.random.uniform(kw, (fan_in, fan_out), jnp.float32, -bound, bound)
    b = jax.random.uniform(kb, (fan_out,), jnp.float32, -bound, bound)
    return w, b


def _reference(x, w1, b1, w2, b2):
    h = jnp.maximum(x @ w1 + b1, 0.0)
    logits = h @ w2 + b2
    return jax.nn.softmax(logits, axis=1)


if __name__ == "__main__":
    # Batch chosen as a non-multiple of the tile so padding/slicing paths are
    # exercised along with multi-step batch tiling (grid=(2,), TB=128).
    batch, input_size, hidden_size, output_size = 200, 32, 64, 16

    key = jax.random.PRNGKey(0)
    kx, k1, k2 = jax.random.split(key, 3)

    x = jax.random.normal(kx, (batch, input_size), jnp.float32)
    w1, b1 = _init_linear(k1, input_size, hidden_size)
    w2, b2 = _init_linear(k2, hidden_size, output_size)

    out = jax.block_until_ready(lnn_forward(x, w1, b1, w2, b2))

    ref = _reference(x, w1, b1, w2, b2)
    assert out.shape == (batch, output_size)
    assert jnp.allclose(out, ref, atol=1e-3, rtol=1e-3), "mismatch vs reference"
    assert jnp.allclose(out.sum(axis=1), 1.0, atol=1e-3), "rows not normalized"

    print("KERNEL_OK")
</pallas_src>

<mosaic_0001>
module attributes {stable_mosaic.version = 11 : i64} {
  func.func @_lnn_kernel(%arg0: i32, %arg1: memref<128x32xf32, #tpu.memory_space<vmem>>, %arg2: memref<32x128xf32, #tpu.memory_space<vmem>>, %arg3: memref<1x128xf32, #tpu.memory_space<vmem>>, %arg4: memref<128x128xf32, #tpu.memory_space<vmem>>, %arg5: memref<1x128xf32, #tpu.memory_space<vmem>>, %arg6: memref<128x128xf32, #tpu.memory_space<vmem>>) attributes {dimension_semantics = [#tpu.dimension_semantics<parallel>], iteration_bounds = array<i64: 2>, scalar_prefetch = 0 : i64, scratch_operands = 0 : i64, tpu.core_type = #tpu.core_type<tc>, window_params = [{transform_indices = @transform_0, window_bounds = array<i64: 128, 32>}, {pipeline_mode = #tpu.pipeline_mode<synchronous>, transform_indices = @transform_1, window_bounds = array<i64: 32, 128>}, {pipeline_mode = #tpu.pipeline_mode<synchronous>, transform_indices = @transform_2, window_bounds = array<i64: 1, 128>}, {pipeline_mode = #tpu.pipeline_mode<synchronous>, transform_indices = @transform_3, window_bounds = array<i64: 128, 128>}, {pipeline_mode = #tpu.pipeline_mode<synchronous>, transform_indices = @transform_4, window_bounds = array<i64: 1, 128>}, {transform_indices = @transform_5, window_bounds = array<i64: 128, 128>}]} {
    %c0 = arith.constant 0 : index
    %c0_0 = arith.constant 0 : index
    %0 = vector.load %arg1[%c0, %c0_0] : memref<128x32xf32, #tpu.memory_space<vmem>>, vector<128x32xf32>
    %c0_1 = arith.constant 0 : index
    %c0_2 = arith.constant 0 : index
    %1 = vector.load %arg2[%c0_1, %c0_2] : memref<32x128xf32, #tpu.memory_space<vmem>>, vector<32x128xf32>
    %cst = arith.constant dense<0.000000e+00> : vector<128x128xf32>
    %2 = tpu.matmul %0, %1, %cst {dimension_numbers = #tpu.dot_dimension_numbers<[1], [0], [0], [1], [0, 0, 1, 1], [], []>} : vector<128x32xf32>, vector<32x128xf32>, vector<128x128xf32> -> vector<128x128xf32>
    %c0_3 = arith.constant 0 : index
    %c0_4 = arith.constant 0 : index
    %3 = vector.load %arg3[%c0_3, %c0_4] : memref<1x128xf32, #tpu.memory_space<vmem>>, vector<1x128xf32>
    %4 = vector.broadcast %3 : vector<1x128xf32> to vector<128x128xf32>
    %5 = arith.addf %2, %4 : vector<128x128xf32>
    %cst_5 = arith.constant 0.000000e+00 : f32
    %6 = vector.broadcast %cst_5 : f32 to vector<128x128xf32>
    %7 = arith.maximumf %5, %6 : vector<128x128xf32>
    %c0_6 = arith.constant 0 : index
    %c0_7 = arith.constant 0 : index
    %8 = vector.load %arg4[%c0_6, %c0_7] : memref<128x128xf32, #tpu.memory_space<vmem>>, vector<128x128xf32>
    %cst_8 = arith.constant dense<0.000000e+00> : vector<128x128xf32>
    %9 = tpu.matmul %7, %8, %cst_8 {dimension_numbers = #tpu.dot_dimension_numbers<[1], [0], [0], [1], [0, 0, 1, 1], [], []>} : vector<128x128xf32>, vector<128x128xf32>, vector<128x128xf32> -> vector<128x128xf32>
    %c0_9 = arith.constant 0 : index
    %c0_10 = arith.constant 0 : index
    %10 = vector.load %arg5[%c0_9, %c0_10] : memref<1x128xf32, #tpu.memory_space<vmem>>, vector<1x128xf32>
    %11 = vector.broadcast %10 : vector<1x128xf32> to vector<128x128xf32>
    %12 = arith.addf %9, %11 : vector<128x128xf32>
    %13 = tpu.iota {dimensions = array<i32: 1>} : vector<128x128xi32>
    %c16_i32 = arith.constant 16 : i32
    %14 = vector.broadcast %c16_i32 : i32 to vector<128x128xi32>
    %15 = arith.cmpi slt, %13, %14 : vector<128x128xi32>
    %cst_11 = arith.constant -1.000000e+30 : f32
    %16 = vector.broadcast %cst_11 : f32 to vector<128x128xf32>
    %17 = arith.select %15, %12, %16 : vector<128x128xi1>, vector<128x128xf32>
    %cst_12 = arith.constant dense<0xFF800000> : vector<128xf32>
    %18 = vector.multi_reduction <maximumf>, %17, %cst_12 [1] : vector<128x128xf32> to vector<128xf32>
    %19 = vector.shape_cast %18 : vector<128xf32> to vector<128x1xf32>
    %20 = vector.broadcast %19 : vector<128x1xf32> to vector<128x128xf32>
    %21 = arith.subf %12, %20 : vector<128x128xf32>
    %22 = math.exp %21 : vector<128x128xf32>
    %cst_13 = arith.constant 0.000000e+00 : f32
    %23 = vector.broadcast %cst_13 : f32 to vector<128x128xf32>
    %24 = arith.select %15, %22, %23 : vector<128x128xi1>, vector<128x128xf32>
    %cst_14 = arith.constant dense<0.000000e+00> : vector<128xf32>
    %25 = vector.multi_reduction <add>, %24, %cst_14 [1] : vector<128x128xf32> to vector<128xf32>
    %26 = vector.shape_cast %25 : vector<128xf32> to vector<128x1xf32>
    %27 = vector.broadcast %26 : vector<128x1xf32> to vector<128x128xf32>
    %28 = arith.divf %24, %27 : vector<128x128xf32>
    %c0_15 = arith.constant 0 : index
    %c0_16 = arith.constant 0 : index
    %29 = vector.load %arg6[%c0_15, %c0_16] : memref<128x128xf32, #tpu.memory_space<vmem>>, vector<128x128xf32>
    tpu.vector_store %arg6[%c0_15, %c0_16], %28 {strides = array<i32>} : memref<128x128xf32, #tpu.memory_space<vmem>>, vector<128x128xf32>,
    return
  }
  func.func @transform_0(%arg0: i32) -> (i32, i32) {
    %c0_i32 = arith.constant 0 : i32
    %c0_i32_0 = arith.constant 0 : i32
    return %arg0, %c0_i32 : i32, i32
  }
  func.func @transform_1(%arg0: i32) -> (i32, i32) {
    %c0_i32 = arith.constant 0 : i32
    %c0_i32_0 = arith.constant 0 : i32
    %c0_i32_1 = arith.constant 0 : i32
    return %c0_i32, %c0_i32_0 : i32, i32
  }
  func.func @transform_2(%arg0: i32) -> (i32, i32) {
    %c0_i32 = arith.constant 0 : i32
    %c0_i32_0 = arith.constant 0 : i32
    %c0_i32_1 = arith.constant 0 : i32
    return %c0_i32, %c0_i32_0 : i32, i32
  }
  func.func @transform_3(%arg0: i32) -> (i32, i32) {
    %c0_i32 = arith.constant 0 : i32
    %c0_i32_0 = arith.constant 0 : i32
    %c0_i32_1 = arith.constant 0 : i32
    return %c0_i32, %c0_i32_0 : i32, i32
  }
  func.func @transform_4(%arg0: i32) -> (i32, i32) {
    %c0_i32 = arith.constant 0 : i32
    %c0_i32_0 = arith.constant 0 : i32
    %c0_i32_1 = arith.constant 0 : i32
    return %c0_i32, %c0_i32_0 : i32, i32
  }
  func.func @transform_5(%arg0: i32) -> (i32, i32) {
    %c0_i32 = arith.constant 0 : i32
    %c0_i32_0 = arith.constant 0 : i32
    return %arg0, %c0_i32 : i32, i32
  }
}

</mosaic_0001>

<llo_original>
// kernel: tpu_custom_call.1
$region0: #{tpu_custom_call.1}
  #allocation0 [shape = 'u32[]', space=smem, size = 0x4, offset = 0x4, fixed_abs, tag = 'smem constant byte address 0x4 - core index']
  #allocation1 [shape = 'u32[144,128]{1,0:T(1,128)}', space=vmem, size = 0x12000, scoped, tag = 'internal scratch']
  %s0 = inlined_call_operand.vmem [shape: f32[256,32], index: 0, kind: input, shape index: {}]
  %s1 = inlined_call_operand.vmem [shape: f32[32,128], index: 1, kind: input, shape index: {}]
  %s2 = inlined_call_operand.vmem [shape: f32[1,128], index: 2, kind: input, shape index: {}]
  %s3 = inlined_call_operand.vmem [shape: f32[128,128], index: 3, kind: input, shape index: {}]
  %s4 = inlined_call_operand.vmem [shape: f32[1,128], index: 4, kind: input, shape index: {}]
  %s5 = inlined_call_operand.hbm [shape: f32[256,128], index: 5, kind: output, shape index: {}]
  %s6 = sld [smem:[#allocation0]]
  $region53: #{tpu_custom_call.1} parent=0
    _
  %s8 = ssub.s32 1, %s6
  %s9 = scalar_select 0, %s8, %s6
  $region1: #{tpu_custom_call.1} parent=0
    #allocation2 [shape = 'u8[131072]{0}', space=vmem, size = 0x20000, scoped, tag = 'output window, operand 0']
    #allocation3 [shape = 's32[2]{0}', space=sflag, size = 0x8, scoped, tag = 'scoped memory for tpu_custom_call.1']
    %10 = vsyncpa [#allocation3], 0
    %s11 = scalar_lea.sflag [#allocation3], 1
    %12 = vsyncpa %s11, 0
    loop: start=0, step=1, limit=4
    $region2: #{tpu_custom_call.1} parent=1 // loop_pre_header
      _
    $region3: #{tpu_custom_call.1} parent=1 // loop_header
      %s14 = sphi 0, %s18
      %p15 = scmp.ge.s32.totalorder %s14, 4
      %s24 = sphi 0, %s26
      %s27 = sphi 0, %s24
      %s28 = sphi 0, %s27
      %s44 = sphi 0, %s28
      %s48 = sphi 0, %s48
      %s50 = sphi 0, %s48
      %s51 = sphi 0, %s50
      %s65 = sphi 0, %s51
      %s69 = sphi 0, %s69
      %s71 = sphi 0, %s69
      %s72 = sphi 0, %s71
      %s86 = sphi 0, %s72
      %s90 = sphi 0, %s90
      %s92 = sphi 0, %s90
      %s93 = sphi 0, %s92
      %s107 = sphi 0, %s93
      %s111 = sphi 0, %s111
      %s113 = sphi 0, %s111
      %s114 = sphi 0, %s113
      %s128 = sphi 0, %s114
      %s134 = sphi 0, %s136
      %s137 = sphi 0, %s134
      %s138 = sphi 0, %s137
      %s154 = sphi 0, %s138
    $region4: #{tpu_custom_call.1} parent=1 // loop_header_branch
      %17 = sbr.rel (%p15) target = $region8
    $region5: #{tpu_custom_call.1} parent=1 // loop_body
      %s19 = ssub.s32 %s14, 1
      %s20 = ssub.s32 %s14, 2
      %s21 = sadd.s32 %s14, 1
      %s22 = ssub.s32 %s14, %s21
      %p23 = scmp.eq.s32.totalorder %s22, 0
      %s25 = sadd.s32 %s24, 1
      %s26 = scalar_select %p23, %s24, %s25
      %p29 = pneg %p23
      %p30 = scmp.eq.s32.totalorder %s14, 1
      %p31 = por %p29, %p30
      %p32 = scmp.ne.s32.totalorder %s24, %s27
      %p33 = scmp.eq.s32.totalorder %s14, 0
      %p34 = por %p32, %p33
      %p35 = scmp.ne.s32.totalorder %s24, %s27
      %p36 = scmp.eq.s32.totalorder %s19, 1
      %p37 = por %p35, %p36
      %p38 = scmp.ne.s32.totalorder %s27, %s28
      %p39 = scmp.eq.s32.totalorder %s19, 0
      %p40 = por %p38, %p39
      %p41 = scmp.ne.s32.totalorder %s27, %s28
      %p42 = scmp.eq.s32.totalorder %s20, 1
      %p43 = por %p41, %p42
      %p45 = scmp.ne.s32.totalorder %s28, %s44
      %p46 = scmp.eq.s32.totalorder %s20, 0
      %p47 = por %p45, %p46
      %s49 = sadd.s32 %s48, 1
      %p52 = scmp.eq.s32.totalorder %s14, 1
      %p53 = scmp.ne.s32.totalorder %s48, %s50
      %p54 = scmp.eq.s32.totalorder %s14, 0
      %p55 = por %p53, %p54
      %p56 = scmp.ne.s32.totalorder %s48, %s50
      %p57 = scmp.eq.s32.totalorder %s19, 1
      %p58 = por %p56, %p57
      %p59 = scmp.ne.s32.totalorder %s50, %s51
      %p60 = scmp.eq.s32.totalorder %s19, 0
      %p61 = por %p59, %p60
      %p62 = scmp.ne.s32.totalorder %s50, %s51
      %p63 = scmp.eq.s32.totalorder %s20, 1
      %p64 = por %p62, %p63
      %p66 = scmp.ne.s32.totalorder %s51, %s65
      %p67 = scmp.eq.s32.totalorder %s20, 0
      %p68 = por %p66, %p67
      %s70 = sadd.s32 %s69, 1
      %p73 = scmp.eq.s32.totalorder %s14, 1
      %p74 = scmp.ne.s32.totalorder %s69, %s71
      %p75 = scmp.eq.s32.totalorder %s14, 0
      %p76 = por %p74, %p75
      %p77 = scmp.ne.s32.totalorder %s69, %s71
      %p78 = scmp.eq.s32.totalorder %s19, 1
      %p79 = por %p77, %p78
      %p80 = scmp.ne.s32.totalorder %s71, %s72
      %p81 = scmp.eq.s32.totalorder %s19, 0
      %p82 = por %p80, %p81
      %p83 = scmp.ne.s32.totalorder %s71, %s72
      %p84 = scmp.eq.s32.totalorder %s20, 1
      %p85 = por %p83, %p84
      %p87 = scmp.ne.s32.totalorder %s72, %s86
      %p88 = scmp.eq.s32.totalorder %s20, 0
      %p89 = por %p87, %p88
      %s91 = sadd.s32 %s90, 1
      %p94 = scmp.eq.s32.totalorder %s14, 1
      %p95 = scmp.ne.s32.totalorder %s90, %s92
      %p96 = scmp.eq.s32.totalorder %s14, 0
      %p97 = por %p95, %p96
      %p98 = scmp.ne.s32.totalorder %s90, %s92
      %p99 = scmp.eq.s32.totalorder %s19, 1
      %p100 = por %p98, %p99
      %p101 = scmp.ne.s32.totalorder %s92, %s93
      %p102 = scmp.eq.s32.totalorder %s19, 0
      %p103 = por %p101, %p102
      %p104 = scmp.ne.s32.totalorder %s92, %s93
      %p105 = scmp.eq.s32.totalorder %s20, 1
      %p106 = por %p104, %p105
      %p108 = scmp.ne.s32.totalorder %s93, %s107
      %p109 = scmp.eq.s32.totalorder %s20, 0
      %p110 = por %p108, %p109
      %s112 = sadd.s32 %s111, 1
      %p115 = scmp.eq.s32.totalorder %s14, 1
      %p116 = scmp.ne.s32.totalorder %s111, %s113
      %p117 = scmp.eq.s32.totalorder %s14, 0
      %p118 = por %p116, %p117
      %p119 = scmp.ne.s32.totalorder %s111, %s113
      %p120 = scmp.eq.s32.totalorder %s19, 1
      %p121 = por %p119, %p120
      %p122 = scmp.ne.s32.totalorder %s113, %s114
      %p123 = scmp.eq.s32.totalorder %s19, 0
      %p124 = por %p122, %p123
      %p125 = scmp.ne.s32.totalorder %s113, %s114
      %p126 = scmp.eq.s32.totalorder %s20, 1
      %p127 = por %p125, %p126
      %p129 = scmp.ne.s32.totalorder %s114, %s128
      %p130 = scmp.eq.s32.totalorder %s20, 0
      %p131 = por %p129, %p130
      %s132 = ssub.s32 %s14, %s21
      %p133 = scmp.eq.s32.totalorder %s132, 0
      %s135 = sadd.s32 %s134, 1
      %s136 = scalar_select %p133, %s134, %s135
      %p139 = pneg %p133
      %p140 = scmp.eq.s32.totalorder %s14, 1
      %p141 = por %p139, %p140
      %p142 = scmp.ne.s32.totalorder %s134, %s137
      %p143 = scmp.eq.s32.totalorder %s14, 0
      %p144 = por %p142, %p143
      %p145 = scmp.ne.s32.totalorder %s134, %s137
      %p146 = scmp.eq.s32.totalorder %s19, 1
      %p147 = por %p145, %p146
      %p148 = scmp.ne.s32.totalorder %s137, %s138
      %p149 = scmp.eq.s32.totalorder %s19, 0
      %p150 = por %p148, %p149
      %p151 = scmp.ne.s32.totalorder %s137, %s138
      %p152 = scmp.eq.s32.totalorder %s20, 1
      %p153 = por %p151, %p152
      %p155 = scmp.ne.s32.totalorder %s138, %s154
      %p156 = scmp.eq.s32.totalorder %s20, 0
      %p157 = por %p155, %p156
      %p158 = scmp.le.s32.totalorder 1, %s14
      %p159 = scmp.lt.s32.totalorder %s14, 3
      %p160 = pnand %p158, %p159
      %p161 = pneg %p160
      // Predicated region
      $region9: #{tpu_custom_call.1} parent=5 // pred_check
        _
      $region10: #{tpu_custom_call.1} parent=5 // pred_check_branch
        %163 = sbr.rel (%p160) target = $region12
      $region11: #{tpu_custom_call.1} parent=5 // pred_region
        %s164 = ssub.s32 %s14, 1
        // Predicated region
        $region13: #{tpu_custom_call.1} parent=11 // pred_check
          %p165 = pneg %p61
        $region14: #{tpu_custom_call.1} parent=11 // pred_check_branch
          %167 = sbr.rel (%p165) target = $region16
        $region15: #{tpu_custom_call.1} parent=11 // pred_region
          _
        $region16: #{tpu_custom_call.1} parent=11 // pred_fallthru
          _
        // Predicated region
        $region17: #{tpu_custom_call.1} parent=11 // pred_check
          %p168 = pneg %p82
        $region18: #{tpu_custom_call.1} parent=11 // pred_check_branch
          %170 = sbr.rel (%p168) target = $region20
        $region19: #{tpu_custom_call.1} parent=11 // pred_region
          _
        $region20: #{tpu_custom_call.1} parent=11 // pred_fallthru
          _
        // Predicated region
        $region21: #{tpu_custom_call.1} parent=11 // pred_check
          %p171 = pneg %p103
        $region22: #{tpu_custom_call.1} parent=11 // pred_check_branch
          %173 = sbr.rel (%p171) target = $region24
        $region23: #{tpu_custom_call.1} parent=11 // pred_region
          _
        $region24: #{tpu_custom_call.1} parent=11 // pred_fallthru
          _
        // Predicated region
        $region25: #{tpu_custom_call.1} parent=11 // pred_check
          %p174 = pneg %p124
        $region26: #{tpu_custom_call.1} parent=11 // pred_check_branch
          %176 = sbr.rel (%p174) target = $region28
        $region27: #{tpu_custom_call.1} parent=11 // pred_region
          _
        $region28: #{tpu_custom_call.1} parent=11 // pred_fallthru
          _
      $region12: #{tpu_custom_call.1} parent=5 // pred_fallthru
        _
      %p177 = scmp.lt.s32.totalorder %s14, 2
      // Predicated region
      $region29: #{tpu_custom_call.1} parent=5 // pred_check
        %p178 = pneg %p177
      $region30: #{tpu_custom_call.1} parent=5 // pred_check_branch
        %180 = sbr.rel (%p178) target = $region32
      $region31: #{tpu_custom_call.1} parent=5 // pred_region
        // Predicated region
        $region33: #{tpu_custom_call.1} parent=31 // pred_check
          %p181 = pneg %p34
        $region34: #{tpu_custom_call.1} parent=31 // pred_check_branch
          %183 = sbr.rel (%p181) target = $region36
        $region35: #{tpu_custom_call.1} parent=31 // pred_region
          %s184 = smul.u32 16, %s14
          %p185 = scmp.lt.s32.totalorder %s184, 31
          %s186 = scalar_select %p185, %s184, 31
          %s187 = smul.addr %s186, 8
          %s188 = scalar_lea.vmem %s0, %s187
          %s189 = smul.u32 16, %s14
        $region36: #{tpu_custom_call.1} parent=31 // pred_fallthru
          _
      $region32: #{tpu_custom_call.1} parent=5 // pred_fallthru
        _
      %p190 = scmp.le.s32.totalorder 1, %s14
      %p191 = scmp.lt.s32.totalorder %s14, 3
      %p192 = pnand %p190, %p191
      %p193 = pneg %p192
      // Predicated region
      $region37: #{tpu_custom_call.1} parent=5 // pred_check
        _
      $region38: #{tpu_custom_call.1} parent=5 // pred_check_branch
        %195 = sbr.rel (%p192) target = $region40
      $region39: #{tpu_custom_call.1} parent=5 // pred_region
        %s196 = ssub.s32 %s14, 1
        %s197 = smul.u32 16, %s19
        %p198 = scmp.lt.s32.totalorder %s197, 31
        %s199 = scalar_select %p198, %s197, 31
        %s200 = smul.addr %s199, 8
        %s201 = scalar_lea.vmem %s0, %s200
        %p202 = pneg %p40
        %p203 = pneg %p37
        %p204 = pneg %p61
        %p205 = pneg %p58
        %p206 = pneg %p82
        %p207 = pneg %p79
        %p208 = pneg %p103
        %p209 = pneg %p100
        %p210 = pneg %p124
        %p211 = pneg %p121
        %p212 = pneg %p150
        %p213 = pneg %p147
        %s214 = sand.u32 %s137, 1
        %s215 = scalar_lea.sflag [#allocation3], %s214
        %s216 = sand.u32 %s137, 1
        %s217 = smul.addr %s216, 128
        %s218 = scalar_lea.vmem [#allocation2], %s217
        %s219 = smul.u32 16, %s19
        %p220 = scmp.lt.s32.totalorder %s219, 31
        %s221 = scalar_select %p220, %s219, 31
        %s222 = smul.addr %s221, 8
        %s223 = scalar_lea.vmem %s0, %s222
        %s224 = smul.u32 16, %s19
        %s225 = smul.u32 16, %s19
        %v226 = vld [vmem:[%s223] sm:$0xff]
        %v227 = vld [vmem:[%s223 + $0x8] sm:$0xff]
        %v228 = vld [vmem:[%s223 + $0x10] sm:$0xff]
        %v229 = vld [vmem:[%s223 + $0x18] sm:$0xff]
        %v230 = vld [vmem:[%s223 + $0x20] sm:$0xff]
        %v231 = vld [vmem:[%s223 + $0x28] sm:$0xff]
        %v232 = vld [vmem:[%s223 + $0x30] sm:$0xff]
        %v233 = vld [vmem:[%s223 + $0x38] sm:$0xff]
        %v234 = vld [vmem:[%s223 + $0x40] sm:$0xff]
        %v235 = vld [vmem:[%s223 + $0x48] sm:$0xff]
        %v236 = vld [vmem:[%s223 + $0x50] sm:$0xff]
        %v237 = vld [vmem:[%s223 + $0x58] sm:$0xff]
        %v238 = vld [vmem:[%s223 + $0x60] sm:$0xff]
        %v239 = vld [vmem:[%s223 + $0x68] sm:$0xff]
        %v240 = vld [vmem:[%s223 + $0x70] sm:$0xff]
        %v241 = vld [vmem:[%s223 + $0x78] sm:$0xff]
        %v242 = vld [vmem:[%s1] sm:$0xff]
        %v243 = vld [vmem:[%s1 + $0x8] sm:$0xff]
        %v244 = vld [vmem:[%s1 + $0x10] sm:$0xff]
        %v245 = vld [vmem:[%s1 + $0x18] sm:$0xff]
        %v246 = vld [vmem:[%s2] sm:$0x1]
        %v248 = vlaneseq
        %v249 = vshrl.u32 %v248, 7
        %v250 = vsub.s32 0, %v249
        %v251 = vrot.slane %v246, %v250
        %vm253 = vcmask 261120
        %v255 = vsel %vm253, %v226, 0
        %v258 = vsel %vm253, %v227, 0
        %v261 = vsel %vm253, %v228, 0
        %v264 = vsel %vm253, %v229, 0
        %v267 = vsel %vm253, %v230, 0
        %v270 = vsel %vm253, %v231, 0
        %v273 = vsel %vm253, %v232, 0
        %v276 = vsel %vm253, %v233, 0
        %v279 = vsel %vm253, %v234, 0
        %v282 = vsel %vm253, %v235, 0
        %v285 = vsel %vm253, %v236, 0
        %v288 = vsel %vm253, %v237, 0
        %v291 = vsel %vm253, %v238, 0
        %v294 = vsel %vm253, %v239, 0
        %v297 = vsel %vm253, %v240, 0
        %v300 = vsel %vm253, %v241, 0
        %302 = vmatprep.subr.mxu0 0.0
        %303 = vmatpush1.msra.mxu0 %v242
        %304 = vmatprep.subr.mxu0 0.0
        %305 = vmatpush1.msra.mxu0 %v243
        %306 = vmatprep.subr.mxu0 0.0
        %307 = vmatpush1.msra.mxu0 %v244
        %308 = vmatprep.subr.mxu0 0.0
        %309 = vmatpush1.msra.mxu0 %v245
        %310 = vmatprep.subr.mxu0 0.0
        %311 = vmatpush1.msra.mxu0 0.0
        %312 = vmatprep.subr.mxu0 0.0
        %313 = vmatpush1.msra.mxu0 0.0
        %314 = vmatprep.subr.mxu0 0.0
        %315 = vmatpush1.msra.mxu0 0.0
        %316 = vmatprep.subr.mxu0 0.0
        %317 = vmatpush1.msra.mxu0 0.0
        %318 = vmatprep.subr.mxu0 0.0
        %319 = vmatpush1.msra.mxu0 0.0
        %320 = vmatprep.subr.mxu0 0.0
        %321 = vmatpush1.msra.mxu0 0.0
        %322 = vmatprep.subr.mxu0 0.0
        %323 = vmatpush1.msra.mxu0 0.0
        %324 = vmatprep.subr.mxu0 0.0
        %325 = vmatpush1.msra.mxu0 0.0
        %326 = vmatprep.subr.mxu0 0.0
        %327 = vmatpush1.msra.mxu0 0.0
        %328 = vmatprep.subr.mxu0 0.0
        %329 = vmatpush1.msra.mxu0 0.0
        %330 = vmatprep.subr.mxu0 0.0
        %331 = vmatpush1.msra.mxu0 0.0
        %332 = vmatprep.subr.mxu0 0.0
        %333 = vmatpush1.msra.mxu0 0.0
        %334 = vmatprep.subr.mxu0 0.0
        %335 = vmatpush1.msra.mxu0 0.0
        %336 = vmatprep.subr.mxu0 0.0
        %337 = vmatpush1.msra.mxu0 0.0
        %338 = vmatprep.subr.mxu0 0.0
        %339 = vmatpush1.msra.mxu0 0.0
        %340 = vmatprep.subr.mxu0 0.0
        %341 = vmatpush1.msra.mxu0 0.0
        %342 = vmatprep.subr.mxu0 0.0
        %343 = vmatpush1.msra.mxu0 0.0
        %344 = vmatprep.subr.mxu0 0.0
        %345 = vmatpush1.msra.mxu0 0.0
        %346 = vmatprep.subr.mxu0 0.0
        %347 = vmatpush1.msra.mxu0 0.0
        %348 = vmatprep.subr.mxu0 0.0
        %349 = vmatpush1.msra.mxu0 0.0
        %350 = vmatprep.subr.mxu0 0.0
        %351 = vmatpush1.msra.mxu0 0.0
        %352 = vmatprep.subr.mxu0 0.0
        %353 = vmatpush1.msra.mxu0 0.0
        %354 = vmatprep.subr.mxu0 0.0
        %355 = vmatpush1.msra.mxu0 0.0
        %356 = vmatprep.subr.mxu0 0.0
        %357 = vmatpush1.msra.mxu0 0.0
        %358 = vmatprep.subr.mxu0 0.0
        %359 = vmatpush1.msra.mxu0 0.0
        %360 = vmatprep.subr.mxu0 0.0
        %361 = vmatpush1.msra.mxu0 0.0
        %362 = vmatprep.subr.mxu0 0.0
        %363 = vmatpush1.msra.mxu0 0.0
        %364 = vmatprep.subr.mxu0 0.0
        %365 = vmatpush1.msra.mxu0 0.0
        %366 = vmatprep.mubr.f32.mxu0 0.0
        %367 = vmatmul.mubr.f32.gmra.mrb[0].mxu0 %v255
        %v368 = vpop.f32.mrb[0].mxu0
        %v369 = vadd.f32 %v251, %v368
        %v370 = vpop.f32.mrb[0].mxu0
        %371 = vmatprep.mubr.f32.mxu0 0.0
        %372 = vmatmul.mubr.f32.gmra.mrb[0].mxu0 %v258
        %v373 = vpop.f32.mrb[0].mxu0
        %v374 = vadd.f32 %v251, %v373
        %v375 = vpop.f32.mrb[0].mxu0
        %376 = vmatprep.mubr.f32.mxu0 0.0
        %377 = vmatmul.mubr.f32.gmra.mrb[0].mxu0 %v261
        %v378 = vpop.f32.mrb[0].mxu0
        %v379 = vadd.f32 %v251, %v378
        %v380 = vpop.f32.mrb[0].mxu0
        %381 = vmatprep.mubr.f32.mxu0 0.0
        %382 = vmatmul.mubr.f32.gmra.mrb[0].mxu0 %v264
        %v383 = vpop.f32.mrb[0].mxu0
        %v384 = vadd.f32 %v251, %v383
        %v385 = vpop.f32.mrb[0].mxu0
        %386 = vmatprep.mubr.f32.mxu0 0.0
        %387 = vmatmul.mubr.f32.gmra.mrb[0].mxu0 %v267
        %v388 = vpop.f32.mrb[0].mxu0
        %v389 = vadd.f32 %v251, %v388
        %v390 = vpop.f32.mrb[0].mxu0
        %391 = vmatprep.mubr.f32.mxu0 0.0
        %392 = vmatmul.mubr.f32.gmra.mrb[0].mxu0 %v270
        %v393 = vpop.f32.mrb[0].mxu0
        %v394 = vadd.f32 %v251, %v393
        %v395 = vpop.f32.mrb[0].mxu0
        %396 = vmatprep.mubr.f32.mxu0 0.0
        %397 = vmatmul.mubr.f32.gmra.mrb[0].mxu0 %v273
        %v398 = vpop.f32.mrb[0].mxu0
        %v399 = vadd.f32 %v251, %v398
        %v400 = vpop.f32.mrb[0].mxu0
        %401 = vmatprep.mubr.f32.mxu0 0.0
        %402 = vmatmul.mubr.f32.gmra.mrb[0].mxu0 %v276
        %v403 = vpop.f32.mrb[0].mxu0
        %v404 = vadd.f32 %v251, %v403
        %v405 = vpop.f32.mrb[0].mxu0
        %406 = vmatprep.mubr.f32.mxu0 0.0
        %407 = vmatmul.mubr.f32.gmra.mrb[0].mxu0 %v279
        %v408 = vpop.f32.mrb[0].mxu0
        %v409 = vadd.f32 %v251, %v408
        %v410 = vpop.f32.mrb[0].mxu0
        %411 = vmatprep.mubr.f32.mxu0 0.0
        %412 = vmatmul.mubr.f32.gmra.mrb[0].mxu0 %v282
        %v413 = vpop.f32.mrb[0].mxu0
        %v414 = vadd.f32 %v251, %v413
        %v415 = vpop.f32.mrb[0].mxu0
        %416 = vmatprep.mubr.f32.mxu0 0.0
        %417 = vmatmul.mubr.f32.gmra.mrb[0].mxu0 %v285
        %v418 = vpop.f32.mrb[0].mxu0
        %v419 = vadd.f32 %v251, %v418
        %v420 = vpop.f32.mrb[0].mxu0
        %421 = vmatprep.mubr.f32.mxu0 0.0
        %422 = vmatmul.mubr.f32.gmra.mrb[0].mxu0 %v288
        %v423 = vpop.f32.mrb[0].mxu0
        %v424 = vadd.f32 %v251, %v423
        %v425 = vpop.f32.mrb[0].mxu0
        %426 = vmatprep.mubr.f32.mxu0 0.0
        %427 = vmatmul.mubr.f32.gmra.mrb[0].mxu0 %v291
        %v428 = vpop.f32.mrb[0].mxu0
        %v429 = vadd.f32 %v251, %v428
        %v430 = vpop.f32.mrb[0].mxu0
        %431 = vmatprep.mubr.f32.mxu0 0.0
        %432 = vmatmul.mubr.f32.gmra.mrb[0].mxu0 %v294
        %v433 = vpop.f32.mrb[0].mxu0
        %v434 = vadd.f32 %v251, %v433
        %v435 = vpop.f32.mrb[0].mxu0
        %436 = vmatprep.mubr.f32.mxu0 0.0
        %437 = vmatmul.mubr.f32.gmra.mrb[0].mxu0 %v297
        %v438 = vpop.f32.mrb[0].mxu0
        %v439 = vadd.f32 %v251, %v438
        %v440 = vpop.f32.mrb[0].mxu0
        %441 = vmatprep.mubr.f32.mxu0 0.0
        %442 = vmatmul.mubr.f32.gmra.mrb[0].mxu0 %v300
        %v443 = vpop.f32.mrb[0].mxu0
        %v444 = vadd.f32 %v251, %v443
        %v445 = vpop.f32.mrb[0].mxu0
        %446 = vdwg.mxu0
        %v447 = vmax.f32 %v369, 0.0
        %v448 = vmax.f32 %v374, 0.0
        %v449 = vmax.f32 %v379, 0.0
        %v450 = vmax.f32 %v384, 0.0
        %v451 = vmax.f32 %v389, 0.0
        %v452 = vmax.f32 %v394, 0.0
        %v453 = vmax.f32 %v399, 0.0
        %v454 = vmax.f32 %v404, 0.0
        %v455 = vmax.f32 %v409, 0.0
        %v456 = vmax.f32 %v414, 0.0
        %v457 = vmax.f32 %v419, 0.0
        %v458 = vmax.f32 %v424, 0.0
        %v459 = vmax.f32 %v429, 0.0
        %v460 = vmax.f32 %v434, 0.0
        %v461 = vmax.f32 %v439, 0.0
        %v462 = vmax.f32 %v444, 0.0
        %v463 = vld [vmem:[%s3] sm:$0xff]
        %v464 = vld [vmem:[%s3 + $0x8] sm:$0xff]
        %v465 = vld [vmem:[%s3 + $0x10] sm:$0xff]
        %v466 = vld [vmem:[%s3 + $0x18] sm:$0xff]
        %v467 = vld [vmem:[%s3 + $0x20] sm:$0xff]
        %v468 = vld [vmem:[%s3 + $0x28] sm:$0xff]
        %v469 = vld [vmem:[%s3 + $0x30] sm:$0xff]
        %v470 = vld [vmem:[%s3 + $0x38] sm:$0xff]
        %v471 = vld [vmem:[%s3 + $0x40] sm:$0xff]
        %v472 = vld [vmem:[%s3 + $0x48] sm:$0xff]
        %v473 = vld [vmem:[%s3 + $0x50] sm:$0xff]
        %v474 = vld [vmem:[%s3 + $0x58] sm:$0xff]
        %v475 = vld [vmem:[%s3 + $0x60] sm:$0xff]
        %v476 = vld [vmem:[%s3 + $0x68] sm:$0xff]
        %v477 = vld [vmem:[%s3 + $0x70] sm:$0xff]
        %v478 = vld [vmem:[%s3 + $0x78] sm:$0xff]
        %v479 = vld [vmem:[%s4] sm:$0x1]
        %v481 = vlaneseq
        %v482 = vshrl.u32 %v481, 7
        %v483 = vsub.s32 0, %v482
        %v484 = vrot.slane %v479, %v483
        %486 = vmatprep.subr.mxu0 0.0
        %487 = vmatpush1.msra.mxu0 %v463
        %488 = vmatprep.subr.mxu0 0.0
        %489 = vmatpush1.msra.mxu0 %v464
        %490 = vmatprep.subr.mxu0 0.0
        %491 = vmatpush1.msra.mxu0 %v465
        %492 = vmatprep.subr.mxu0 0.0
        %493 = vmatpush1.msra.mxu0 %v466
        %494 = vmatprep.subr.mxu0 0.0
        %495 = vmatpush1.msra.mxu0 %v467
        %496 = vmatprep.subr.mxu0 0.0
        %497 = vmatpush1.msra.mxu0 %v468
        %498 = vmatprep.subr.mxu0 0.0
        %499 = vmatpush1.msra.mxu0 %v469
        %500 = vmatprep.subr.mxu0 0.0
        %501 = vmatpush1.msra.mxu0 %v470
        %502 = vmatprep.subr.mxu0 0.0
        %503 = vmatpush1.msra.mxu0 %v471
        %504 = vmatprep.subr.mxu0 0.0
        %505 = vmatpush1.msra.mxu0 %v472
        %506 = vmatprep.subr.mxu0 0.0
        %507 = vmatpush1.msra.mxu0 %v473
        %508 = vmatprep.subr.mxu0 0.0
        %509 = vmatpush1.msra.mxu0 %v474
        %510 = vmatprep.subr.mxu0 0.0
        %511 = vmatpush1.msra.mxu0 %v475
        %512 = vmatprep.subr.mxu0 0.0
        %513 = vmatpush1.msra.mxu0 %v476
        %514 = vmatprep.subr.mxu0 0.0
        %515 = vmatpush1.msra.mxu0 %v477
        %516 = vmatprep.subr.mxu0 0.0
        %517 = vmatpush1.msra.mxu0 %v478
        %518 = vmatprep.subr.mxu0 0.0
        %519 = vmatpush1.msra.mxu0 0.0
        %520 = vmatprep.subr.mxu0 0.0
        %521 = vmatpush1.msra.mxu0 0.0
        %522 = vmatprep.subr.mxu0 0.0
        %523 = vmatpush1.msra.mxu0 0.0
        %524 = vmatprep.subr.mxu0 0.0
        %525 = vmatpush1.msra.mxu0 0.0
        %526 = vmatprep.subr.mxu0 0.0
        %527 = vmatpush1.msra.mxu0 0.0
        %528 = vmatprep.subr.mxu0 0.0
        %529 = vmatpush1.msra.mxu0 0.0
        %530 = vmatprep.subr.mxu0 0.0
        %531 = vmatpush1.msra.mxu0 0.0
        %532 = vmatprep.subr.mxu0 0.0
        %533 = vmatpush1.msra.mxu0 0.0
        %534 = vmatprep.subr.mxu0 0.0
        %535 = vmatpush1.msra.mxu0 0.0
        %536 = vmatprep.subr.mxu0 0.0
        %537 = vmatpush1.msra.mxu0 0.0
        %538 = vmatprep.subr.mxu0 0.0
        %539 = vmatpush1.msra.mxu0 0.0
        %540 = vmatprep.subr.mxu0 0.0
        %541 = vmatpush1.msra.mxu0 0.0
        %542 = vmatprep.subr.mxu0 0.0
        %543 = vmatpush1.msra.mxu0 0.0
        %544 = vmatprep.subr.mxu0 0.0
        %545 = vmatpush1.msra.mxu0 0.0
        %546 = vmatprep.subr.mxu0 0.0
        %547 = vmatpush1.msra.mxu0 0.0
        %548 = vmatprep.subr.mxu0 0.0
        %549 = vmatpush1.msra.mxu0 0.0
        %550 = vmatprep.mubr.f32.mxu0 0.0
        %551 = vmatmul.mubr.f32.gmra.mrb[0].mxu0 %v447
        %v552 = vpop.f32.mrb[0].mxu0
        %v553 = vadd.f32 %v484, %v552
        %v554 = vpop.f32.mrb[0].mxu0
        %555 = vmatprep.mubr.f32.mxu0 0.0
        %556 = vmatmul.mubr.f32.gmra.mrb[0].mxu0 %v448
        %v557 = vpop.f32.mrb[0].mxu0
        %v558 = vadd.f32 %v484, %v557
        %v559 = vpop.f32.mrb[0].mxu0
        %560 = vmatprep.mubr.f32.mxu0 0.0
        %561 = vmatmul.mubr.f32.gmra.mrb[0].mxu0 %v449
        %v562 = vpop.f32.mrb[0].mxu0
        %v563 = vadd.f32 %v484, %v562
        %v564 = vpop.f32.mrb[0].mxu0
        %565 = vmatprep.mubr.f32.mxu0 0.0
        %566 = vmatmul.mubr.f32.gmra.mrb[0].mxu0 %v450
        %v567 = vpop.f32.mrb[0].mxu0
        %v568 = vadd.f32 %v484, %v567
        %v569 = vpop.f32.mrb[0].mxu0
        %570 = vmatprep.mubr.f32.mxu0 0.0
        %571 = vmatmul.mubr.f32.gmra.mrb[0].mxu0 %v451
        %v572 = vpop.f32.mrb[0].mxu0
        %v573 = vadd.f32 %v484, %v572
        %v574 = vpop.f32.mrb[0].mxu0
        %575 = vmatprep.mubr.f32.mxu0 0.0
        %576 = vmatmul.mubr.f32.gmra.mrb[0].mxu0 %v452
        %v577 = vpop.f32.mrb[0].mxu0
        %v578 = vadd.f32 %v484, %v577
        %v579 = vpop.f32.mrb[0].mxu0
        %580 = vmatprep.mubr.f32.mxu0 0.0
        %581 = vmatmul.mubr.f32.gmra.mrb[0].mxu0 %v453
        %v582 = vpop.f32.mrb[0].mxu0
        %v583 = vadd.f32 %v484, %v582
        %v584 = vpop.f32.mrb[0].mxu0
        %585 = vmatprep.mubr.f32.mxu0 0.0
        %586 = vmatmul.mubr.f32.gmra.mrb[0].mxu0 %v454
        %v587 = vpop.f32.mrb[0].mxu0
        %v588 = vadd.f32 %v484, %v587
        %v589 = vpop.f32.mrb[0].mxu0
        %590 = vmatprep.mubr.f32.mxu0 0.0
        %591 = vmatmul.mubr.f32.gmra.mrb[0].mxu0 %v455
        %v592 = vpop.f32.mrb[0].mxu0
        %v593 = vadd.f32 %v484, %v592
        %v594 = vpop.f32.mrb[0].mxu0
        %595 = vmatprep.mubr.f32.mxu0 0.0
        %596 = vmatmul.mubr.f32.gmra.mrb[0].mxu0 %v456
        %v597 = vpop.f32.mrb[0].mxu0
        %v598 = vadd.f32 %v484, %v597
        %v599 = vpop.f32.mrb[0].mxu0
        %600 = vmatprep.mubr.f32.mxu0 0.0
        %601 = vmatmul.mubr.f32.gmra.mrb[0].mxu0 %v457
        %v602 = vpop.f32.mrb[0].mxu0
        %v603 = vadd.f32 %v484, %v602
        %v604 = vpop.f32.mrb[0].mxu0
        %605 = vmatprep.mubr.f32.mxu0 0.0
        %606 = vmatmul.mubr.f32.gmra.mrb[0].mxu0 %v458
        %v607 = vpop.f32.mrb[0].mxu0
        %v608 = vadd.f32 %v484, %v607
        %v609 = vpop.f32.mrb[0].mxu0
        %610 = vmatprep.mubr.f32.mxu0 0.0
        %611 = vmatmul.mubr.f32.gmra.mrb[0].mxu0 %v459
        %v612 = vpop.f32.mrb[0].mxu0
        %v613 = vadd.f32 %v484, %v612
        %v614 = vpop.f32.mrb[0].mxu0
        %615 = vmatprep.mubr.f32.mxu0 0.0
        %616 = vmatmul.mubr.f32.gmra.mrb[0].mxu0 %v460
        %v617 = vpop.f32.mrb[0].mxu0
        %v618 = vadd.f32 %v484, %v617
        %v619 = vpop.f32.mrb[0].mxu0
        %620 = vmatprep.mubr.f32.mxu0 0.0
        %621 = vmatmul.mubr.f32.gmra.mrb[0].mxu0 %v461
        %v622 = vpop.f32.mrb[0].mxu0
        %v623 = vadd.f32 %v484, %v622
        %v624 = vpop.f32.mrb[0].mxu0
        %625 = vmatprep.mubr.f32.mxu0 0.0
        %626 = vmatmul.mubr.f32.gmra.mrb[0].mxu0 %v462
        %v627 = vpop.f32.mrb[0].mxu0
        %v628 = vadd.f32 %v484, %v627
        %v629 = vpop.f32.mrb[0].mxu0
        %630 = vdwg.mxu0
        %v631 = vlaneseq
        %v632 = vand.u32 %v631, 127
        %vm633 = vcmp.lt.s32.totalorder %v632, 16
        %v634 = vsel %vm633, %v553, -1e+30
        %v635 = vsel %vm633, %v558, -1e+30
        %v636 = vsel %vm633, %v563, -1e+30
        %v637 = vsel %vm633, %v568, -1e+30
        %v638 = vsel %vm633, %v573, -1e+30
        %v639 = vsel %vm633, %v578, -1e+30
        %v640 = vsel %vm633, %v583, -1e+30
        %v641 = vsel %vm633, %v588, -1e+30
        %v642 = vsel %vm633, %v593, -1e+30
        %v643 = vsel %vm633, %v598, -1e+30
        %v644 = vsel %vm633, %v603, -1e+30
        %v645 = vsel %vm633, %v608, -1e+30
        %v646 = vsel %vm633, %v613, -1e+30
        %v647 = vsel %vm633, %v618, -1e+30
        %v648 = vsel %vm633, %v623, -1e+30
        %v649 = vsel %vm633, %v628, -1e+30
        %650 = vmax.xlane.f32.xlu0 %v634
        %v651 = vpop.xlane.xlu0 %650
        %652 = vmax.xlane.f32.xlu0 %v635
        %v653 = vpop.xlane.xlu0 %652
        %654 = vmax.xlane.f32.xlu0 %v636
        %v655 = vpop.xlane.xlu0 %654
        %656 = vmax.xlane.f32.xlu0 %v637
        %v657 = vpop.xlane.xlu0 %656
        %658 = vmax.xlane.f32.xlu0 %v638
        %v659 = vpop.xlane.xlu0 %658
        %660 = vmax.xlane.f32.xlu0 %v639
        %v661 = vpop.xlane.xlu0 %660
        %662 = vmax.xlane.f32.xlu0 %v640
        %v663 = vpop.xlane.xlu0 %662
        %664 = vmax.xlane.f32.xlu0 %v641
        %v665 = vpop.xlane.xlu0 %664
        %666 = vmax.xlane.f32.xlu0 %v642
        %v667 = vpop.xlane.xlu0 %666
        %668 = vmax.xlane.f32.xlu0 %v643
        %v669 = vpop.xlane.xlu0 %668
        %670 = vmax.xlane.f32.xlu0 %v644
        %v671 = vpop.xlane.xlu0 %670
        %672 = vmax.xlane.f32.xlu0 %v645
        %v673 = vpop.xlane.xlu0 %672
        %674 = vmax.xlane.f32.xlu0 %v646
        %v675 = vpop.xlane.xlu0 %674
        %676 = vmax.xlane.f32.xlu0 %v647
        %v677 = vpop.xlane.xlu0 %676
        %678 = vmax.xlane.f32.xlu0 %v648
        %v679 = vpop.xlane.xlu0 %678
        %680 = vmax.xlane.f32.xlu0 %v649
        %v681 = vpop.xlane.xlu0 %680
        %v682 = vsub.f32 %v553, %v651
        %v683 = vsub.f32 %v558, %v653
        %v684 = vsub.f32 %v563, %v655
        %v685 = vsub.f32 %v568, %v657
        %v686 = vsub.f32 %v573, %v659
        %v687 = vsub.f32 %v578, %v661
        %v688 = vsub.f32 %v583, %v663
        %v689 = vsub.f32 %v588, %v665
        %v690 = vsub.f32 %v593, %v667
        %v691 = vsub.f32 %v598, %v669
        %v692 = vsub.f32 %v603, %v671
        %v693 = vsub.f32 %v608, %v673
        %v694 = vsub.f32 %v613, %v675
        %v695 = vsub.f32 %v618, %v677
        %v696 = vsub.f32 %v623, %v679
        %v697 = vsub.f32 %v628, %v681
        %v698 = vmul.f32 %v682, 1.442695
        %v699 = vpow.pop %v698
        %v700 = vmul.f32 %v683, 1.442695
        %v701 = vpow.pop %v700
        %v702 = vmul.f32 %v684, 1.442695
        %v703 = vpow.pop %v702
        %v704 = vmul.f32 %v685, 1.442695
        %v705 = vpow.pop %v704
        %v706 = vmul.f32 %v686, 1.442695
        %v707 = vpow.pop %v706
        %v708 = vmul.f32 %v687, 1.442695
        %v709 = vpow.pop %v708
        %v710 = vmul.f32 %v688, 1.442695
        %v711 = vpow.pop %v710
        %v712 = vmul.f32 %v689, 1.442695
        %v713 = vpow.pop %v712
        %v714 = vmul.f32 %v690, 1.442695
        %v715 = vpow.pop %v714
        %v716 = vmul.f32 %v691, 1.442695
        %v717 = vpow.pop %v716
        %v718 = vmul.f32 %v692, 1.442695
        %v719 = vpow.pop %v718
        %v720 = vmul.f32 %v693, 1.442695
        %v721 = vpow.pop %v720
        %v722 = vmul.f32 %v694, 1.442695
        %v723 = vpow.pop %v722
        %v724 = vmul.f32 %v695, 1.442695
        %v725 = vpow.pop %v724
        %v726 = vmul.f32 %v696, 1.442695
        %v727 = vpow.pop %v726
        %v728 = vmul.f32 %v697, 1.442695
        %v729 = vpow.pop %v728
        %v730 = vsel %vm633, %v699, 0.0
        %v731 = vsel %vm633, %v701, 0.0
        %v732 = vsel %vm633, %v703, 0.0
        %v733 = vsel %vm633, %v705, 0.0
        %v734 = vsel %vm633, %v707, 0.0
        %v735 = vsel %vm633, %v709, 0.0
        %v736 = vsel %vm633, %v711, 0.0
        %v737 = vsel %vm633, %v713, 0.0
        %v738 = vsel %vm633, %v715, 0.0
        %v739 = vsel %vm633, %v717, 0.0
        %v740 = vsel %vm633, %v719, 0.0
        %v741 = vsel %vm633, %v721, 0.0
        %v742 = vsel %vm633, %v723, 0.0
        %v743 = vsel %vm633, %v725, 0.0
        %v744 = vsel %vm633, %v727, 0.0
        %v745 = vsel %vm633, %v729, 0.0
        %746 = vadd.xlane.f32.xlu0 %v730
        %v747 = vpop.xlane.xlu0 %746
        %748 = vadd.xlane.f32.xlu0 %v731
        %v749 = vpop.xlane.xlu0 %748
        %750 = vadd.xlane.f32.xlu0 %v732
        %v751 = vpop.xlane.xlu0 %750
        %752 = vadd.xlane.f32.xlu0 %v733
        %v753 = vpop.xlane.xlu0 %752
        %754 = vadd.xlane.f32.xlu0 %v734
        %v755 = vpop.xlane.xlu0 %754
        %756 = vadd.xlane.f32.xlu0 %v735
        %v757 = vpop.xlane.xlu0 %756
        %758 = vadd.xlane.f32.xlu0 %v736
        %v759 = vpop.xlane.xlu0 %758
        %760 = vadd.xlane.f32.xlu0 %v737
        %v761 = vpop.xlane.xlu0 %760
        %762 = vadd.xlane.f32.xlu0 %v738
        %v763 = vpop.xlane.xlu0 %762
        %764 = vadd.xlane.f32.xlu0 %v739
        %v765 = vpop.xlane.xlu0 %764
        %766 = vadd.xlane.f32.xlu0 %v740
        %v767 = vpop.xlane.xlu0 %766
        %768 = vadd.xlane.f32.xlu0 %v741
        %v769 = vpop.xlane.xlu0 %768
        %770 = vadd.xlane.f32.xlu0 %v742
        %v771 = vpop.xlane.xlu0 %770
        %772 = vadd.xlane.f32.xlu0 %v743
        %v773 = vpop.xlane.xlu0 %772
        %774 = vadd.xlane.f32.xlu0 %v744
        %v775 = vpop.xlane.xlu0 %774
        %776 = vadd.xlane.f32.xlu0 %v745
        %v777 = vpop.xlane.xlu0 %776
        %v778 = vrcp.pop %v747
        %v779 = vmul.f32 %v730, %v778
        %v780 = vrcp.pop %v749
        %v781 = vmul.f32 %v731, %v780
        %v782 = vrcp.pop %v751
        %v783 = vmul.f32 %v732, %v782
        %v784 = vrcp.pop %v753
        %v785 = vmul.f32 %v733, %v784
        %v786 = vrcp.pop %v755
        %v787 = vmul.f32 %v734, %v786
        %v788 = vrcp.pop %v757
        %v789 = vmul.f32 %v735, %v788
        %v790 = vrcp.pop %v759
        %v791 = vmul.f32 %v736, %v790
        %v792 = vrcp.pop %v761
        %v793 = vmul.f32 %v737, %v792
        %v794 = vrcp.pop %v763
        %v795 = vmul.f32 %v738, %v794
        %v796 = vrcp.pop %v765
        %v797 = vmul.f32 %v739, %v796
        %v798 = vrcp.pop %v767
        %v799 = vmul.f32 %v740, %v798
        %v800 = vrcp.pop %v769
        %v801 = vmul.f32 %v741, %v800
        %v802 = vrcp.pop %v771
        %v803 = vmul.f32 %v742, %v802
        %v804 = vrcp.pop %v773
        %v805 = vmul.f32 %v743, %v804
        %v806 = vrcp.pop %v775
        %v807 = vmul.f32 %v744, %v806
        %v808 = vrcp.pop %v777
        %v809 = vmul.f32 %v745, %v808
        %810 = vst [vmem:[%s218] sm:$0xff] %v779
        %811 = vst [vmem:[%s218 + $0x8] sm:$0xff] %v781
        %812 = vst [vmem:[%s218 + $0x10] sm:$0xff] %v783
        %813 = vst [vmem:[%s218 + $0x18] sm:$0xff] %v785
        %814 = vst [vmem:[%s218 + $0x20] sm:$0xff] %v787
        %815 = vst [vmem:[%s218 + $0x28] sm:$0xff] %v789
        %816 = vst [vmem:[%s218 + $0x30] sm:$0xff] %v791
        %817 = vst [vmem:[%s218 + $0x38] sm:$0xff] %v793
        %818 = vst [vmem:[%s218 + $0x40] sm:$0xff] %v795
        %819 = vst [vmem:[%s218 + $0x48] sm:$0xff] %v797
        %820 = vst [vmem:[%s218 + $0x50] sm:$0xff] %v799
        %821 = vst [vmem:[%s218 + $0x58] sm:$0xff] %v801
        %822 = vst [vmem:[%s218 + $0x60] sm:$0xff] %v803
        %823 = vst [vmem:[%s218 + $0x68] sm:$0xff] %v805
        %824 = vst [vmem:[%s218 + $0x70] sm:$0xff] %v807
        %825 = vst [vmem:[%s218 + $0x78] sm:$0xff] %v809
        %s826 = sand.u32 %s137, 1
        %s827 = scalar_lea.sflag [#allocation3], %s826
        %s828 = sand.u32 %s137, 1
        %s829 = smul.addr %s828, 128
        %s830 = scalar_lea.vmem [#allocation2], %s829
        // Predicated region
        $region41: #{tpu_custom_call.1} parent=39 // pred_check
          %p831 = pneg %p147
        $region42: #{tpu_custom_call.1} parent=39 // pred_check_branch
          %833 = sbr.rel (%p831) target = $region44
        $region43: #{tpu_custom_call.1} parent=39 // pred_region
          %s834 = smul.u32 16, %s19
          %s836 = ssub.s32 2048, 2048
          %837 = vsyncadd %s827, %s836
          %s838 = smul.addr %s834, 128
          %s839 = scalar_lea.hbm %s5, %s838
          %s840 = sshll.u32 %s830, 4
          %s841 = int_to_ptr.vmem [resolvable:$true] %s840
          %846 = dma.vmem_to_hbm [thread:$0]  %s841, 2048, %s839, %s827, 128, 128, 8
        $region44: #{tpu_custom_call.1} parent=39 // pred_fallthru
          _
      $region40: #{tpu_custom_call.1} parent=5 // pred_fallthru
        _
      %p847 = scmp.le.s32.totalorder 2, %s14
      // Predicated region
      $region45: #{tpu_custom_call.1} parent=5 // pred_check
        %p848 = pneg %p847
      $region46: #{tpu_custom_call.1} parent=5 // pred_check_branch
        %850 = sbr.rel (%p848) target = $region48
      $region47: #{tpu_custom_call.1} parent=5 // pred_region
        %s851 = ssub.s32 %s14, 2
        // Predicated region
        $region49: #{tpu_custom_call.1} parent=47 // pred_check
          %p852 = pneg %p153
        $region50: #{tpu_custom_call.1} parent=47 // pred_check_branch
          %854 = sbr.rel (%p852) target = $region52
        $region51: #{tpu_custom_call.1} parent=47 // pred_region
          %s855 = sand.u32 %s138, 1
          %s856 = scalar_lea.sflag [#allocation3], %s855
          %s857 = sand.u32 %s138, 1
          %s858 = smul.addr %s857, 128
          %s859 = scalar_lea.vmem [#allocation2], %s858
          %860 = dma.done %s856, 2048
        $region52: #{tpu_custom_call.1} parent=47 // pred_fallthru
          _
      $region48: #{tpu_custom_call.1} parent=5 // pred_fallthru
        _
    $region6: #{tpu_custom_call.1} parent=1 // loop_footer
      %s18 = sadd.s32 1, %s14
    $region7: #{tpu_custom_call.1} parent=1 // loop_footer_branch
      %13 = sbr.rel target = $region3
    $region8: #{tpu_custom_call.1} parent=1 // loop_exit
      _
    %861 = vsyncpa [#allocation3], 1
    %s862 = scalar_lea.sflag [#allocation3], 1
    %863 = vsyncpa %s862, 1

</llo_original>
